<compile_context>
chip_gen: v7x
topology: tpu7x:2x2x1
jax: 0.10.0
libtpu: 0.0.40
codegen_flags: <defaults>
</compile_context>

<pallas_src>
import functools

import jax
import jax.numpy as jnp
from jax.experimental import pallas as pl
from jax.experimental.pallas import tpu as pltpu

LRELU_SLOPE = 0.01


def _round_up(x, m):
    return (x + m - 1) // m * m


# ---------------------------------------------------------------------------
# Pallas kernel 1: batched tiled matmul + fused bias (+ optional LeakyReLU epilogue)
# ---------------------------------------------------------------------------
def _bmm_bias_kernel(a_ref, b_ref, bias_ref, o_ref, acc_ref, *, slope):
    @pl.when(pl.program_id(3) == 0)
    def _():
        acc_ref[...] = jnp.zeros_like(acc_ref)

    acc_ref[...] += jnp.dot(a_ref[0], b_ref[0],
                            preferred_element_type=jnp.float32)

    @pl.when(pl.program_id(3) == pl.num_programs(3) - 1)
    def _():
        z = acc_ref[...] + bias_ref[0]
        if slope is not None:
            z = jnp.where(z >= 0, z, slope * z)
        o_ref[0] = z.astype(o_ref.dtype)


def pallas_bmm_bias(a, b, bias, *, slope=None, use_bf16=True):
    """a: (G, M, K), b: (G, K, N), bias: (G, N) -> (G, M, N) float32."""
    G, M, K = a.shape
    Nout = b.shape[2]

    # --- per-layer tile right-sizing ---
    tm = min(256, _round_up(M, 16))
    if Nout % 256 == 0:
        tn = 256
    elif Nout % 128 == 0:
        tn = 128
    elif 64 <= Nout < 128 and Nout % 8 == 0:
        tn = Nout                      # full-dim narrow N (e.g. Cout=64): no padding
    else:
        tn = 128                       # tiny N (e.g. Cout=1): pad to one lane register
    tk = min(512, _round_up(K, 128))

    Mp, Kp, Np = _round_up(M, tm), _round_up(K, tk), _round_up(Nout, tn)
    cdt = jnp.bfloat16 if use_bf16 else jnp.float32
    a_p = jnp.pad(a, ((0, 0), (0, Mp - M), (0, Kp - K))).astype(cdt)
    b_p = jnp.pad(b, ((0, 0), (0, Kp - K), (0, Np - Nout))).astype(cdt)
    bias_p = jnp.pad(bias.astype(jnp.float32),
                     ((0, 0), (0, Np - Nout))).reshape(G, 1, Np)

    grid = (G, Mp // tm, Np // tn, Kp // tk)
    out = pl.pallas_call(
        functools.partial(_bmm_bias_kernel, slope=slope),
        out_shape=jax.ShapeDtypeStruct((G, Mp, Np), jnp.float32),
        grid_spec=pltpu.PrefetchScalarGridSpec(
            num_scalar_prefetch=0,
            grid=grid,
            in_specs=[
                pl.BlockSpec((1, tm, tk), lambda g, i, j, k: (g, i, k)),
                pl.BlockSpec((1, tk, tn), lambda g, i, j, k: (g, k, j)),
                pl.BlockSpec((1, 1, tn), lambda g, i, j, k: (g, 0, j)),
            ],
            out_specs=pl.BlockSpec((1, tm, tn), lambda g, i, j, k: (g, i, j)),
            scratch_shapes=[pltpu.VMEM((tm, tn), jnp.float32)],
        ),
        compiler_params=pltpu.CompilerParams(
            dimension_semantics=("parallel", "parallel", "parallel", "arbitrary")),
    )(a_p, b_p, bias_p)
    return out[:, :M, :Nout]


# ---------------------------------------------------------------------------
# Pallas kernel 2a: per-sample per-channel affine  y = x * sd[n,c] + mn[n,c]
# ---------------------------------------------------------------------------
def _sample_affine_kernel(x_ref, s_ref, t_ref, o_ref):
    o_ref[...] = x_ref[...] * s_ref[...] + t_ref[...]


def apply_sample_affine(y, sd, mn):
    """y: (N,H,W,C) NHWC ; sd, mn: (N,C,1,1) -> y * sd + mn."""
    N, H, W, C = y.shape
    HW = H * W
    x = y.reshape(N, HW, C).astype(jnp.float32)
    s = sd[:, :, 0, 0].reshape(N, 1, C).astype(jnp.float32)
    t = mn[:, :, 0, 0].reshape(N, 1, C).astype(jnp.float32)
    out = pl.pallas_call(
        _sample_affine_kernel,
        out_shape=jax.ShapeDtypeStruct((N, HW, C), jnp.float32),
        grid_spec=pltpu.PrefetchScalarGridSpec(
            num_scalar_prefetch=0,
            grid=(N,),
            in_specs=[
                pl.BlockSpec((1, HW, C), lambda n: (n, 0, 0)),
                pl.BlockSpec((1, 1, C), lambda n: (n, 0, 0)),
                pl.BlockSpec((1, 1, C), lambda n: (n, 0, 0)),
            ],
            out_specs=pl.BlockSpec((1, HW, C), lambda n: (n, 0, 0)),
        ),
        compiler_params=pltpu.CompilerParams(dimension_semantics=("parallel",)),
    )(x, s, t)
    return out.reshape(N, H, W, C)


# ---------------------------------------------------------------------------
# Pallas kernel 2b: per-channel affine + optional LeakyReLU (used by BatchNorm apply)
# ---------------------------------------------------------------------------
def _chan_affine_kernel(x_ref, s_ref, t_ref, o_ref, *, slope):
    z = x_ref[...] * s_ref[...] + t_ref[...]
    if slope is not None:
        z = jnp.where(z >= 0, z, slope * z)
    o_ref[...] = z.astype(o_ref.dtype)


def chan_affine_act(x2d, scale, shift, slope=None):
    M, C = x2d.shape
    # lane-densify narrow channel dims (e.g. C=64 -> view as 128-wide rows)
    if C < 128 and 128 % C == 0 and M % (128 // C) == 0:
        r = 128 // C
        out = chan_affine_act(x2d.reshape(M // r, C * r),
                              jnp.tile(scale, r), jnp.tile(shift, r), slope)
        return out.reshape(M, C)

    tm = min(1024, _round_up(M, 8))
    Mp = _round_up(M, tm)
    xp = x2d.astype(jnp.float32)
    if Mp != M:
        xp = jnp.pad(xp, ((0, Mp - M), (0, 0)))
    out = pl.pallas_call(
        functools.partial(_chan_affine_kernel, slope=slope),
        out_shape=jax.ShapeDtypeStruct((Mp, C), jnp.float32),
        grid_spec=pltpu.PrefetchScalarGridSpec(
            num_scalar_prefetch=0,
            grid=(Mp // tm,),
            in_specs=[
                pl.BlockSpec((tm, C), lambda i: (i, 0)),
                pl.BlockSpec((1, C), lambda i: (0, 0)),
                pl.BlockSpec((1, C), lambda i: (0, 0)),
            ],
            out_specs=pl.BlockSpec((tm, C), lambda i: (i, 0)),
        ),
        compiler_params=pltpu.CompilerParams(dimension_semantics=("parallel",)),
    )(xp, scale.reshape(1, C).astype(jnp.float32),
      shift.reshape(1, C).astype(jnp.float32))
    return out[:M]


def batchnorm_act(y, gamma, beta, slope=None, eps=1e-5):
    # training-mode BatchNorm2d: batch statistics over (N, H, W) per channel.
    N, H, W, C = y.shape
    x2 = y.reshape(-1, C)
    mean = jnp.mean(x2, axis=0)
    var = jnp.mean(jnp.square(x2 - mean), axis=0)   # biased, as PyTorch uses in training
    scale = gamma / jnp.sqrt(var + eps)
    shift = beta - mean * scale
    return chan_affine_act(x2, scale, shift, slope).reshape(y.shape)


# ---------------------------------------------------------------------------
# ConvTranspose2d glue
# TODO(synk): im2col patches are still materialized by XLA (a single fused pad+stack);
#             a fully in-kernel im2col would also remove the k*k HBM duplication.
# ---------------------------------------------------------------------------
def conv_transpose2d_s1(x, W, bias, padding=1, *, slope=None, use_bf16=True):
    """stride=1 ConvTranspose2d (k=3, p=1 here) = conv with flipped kernel."""
    Cin, Cout, k, _ = W.shape
    N, H, Wd, _ = x.shape
    pad = k - 1 - padding
    xp = jnp.pad(x, ((0, 0), (pad, pad), (pad, pad), (0, 0)))
    Ho, Wo = H + 2 * pad - k + 1, Wd + 2 * pad - k + 1
    cols = [xp[:, kh:kh + Ho, kw:kw + Wo, :] for kh in range(k) for kw in range(k)]
    patches = jnp.stack(cols, axis=3).reshape(N * Ho * Wo, k * k * Cin)
    Wmat = jnp.flip(W, axis=(2, 3)).transpose(2, 3, 0, 1).reshape(k * k * Cin, Cout)
    out = pallas_bmm_bias(patches[None], Wmat[None], bias[None],
                          slope=slope, use_bf16=use_bf16)
    return out[0].reshape(N, Ho, Wo, Cout)


def conv_transpose2d_s2(x, W, bias, *, slope=None, use_bf16=True):
    """stride=2, k=4, p=1 ConvTranspose2d via output-phase (sub-pixel) decomposition.

    out[n, 2m+ph, 2n'+pw] = sum_{dh,dw,ci} xpad1[n, m+ph+dh, n'+pw+dw, ci]
                                           * Wf[ci, co, ph+2dh, pw+2dw]
    where Wf is the spatially flipped kernel and xpad1 is x padded by 1.
    No dilation zeros are ever formed; the 4 phases run as one batched matmul.
    """
    Cin, Cout, k, _ = W.shape   # k == 4
    N, H, Wd, _ = x.shape
    xp = jnp.pad(x, ((0, 0), (1, 1), (1, 1), (0, 0)))
    Wf = jnp.flip(W, axis=(2, 3))                       # (Cin, Cout, kh, kw)

    A_list, B_list = [], []
    for ph in (0, 1):
        for pw in (0, 1):
            cols = [xp[:, ph + dh:ph + dh + H, pw + dw:pw + dw + Wd, :]
                    for dh in (0, 1) for dw in (0, 1)]
            A_list.append(jnp.stack(cols, axis=3).reshape(N * H * Wd, 4 * Cin))
            wsub = jnp.stack([Wf[:, :, ph + 2 * dh, pw + 2 * dw]
                              for dh in (0, 1) for dw in (0, 1)], axis=0)  # (4,Cin,Cout)
            B_list.append(wsub.reshape(4 * Cin, Cout))

    A = jnp.stack(A_list, axis=0)                       # (4, M, 4*Cin)
    Bm = jnp.stack(B_list, axis=0)                      # (4, 4*Cin, Cout)
    biasb = jnp.broadcast_to(bias[None], (4, Cout))
    out = pallas_bmm_bias(A, Bm, biasb, slope=slope, use_bf16=use_bf16)  # (4, M, Cout)

    # interleave phases: phase index p = ph*2 + pw -> output[2m+ph, 2n+pw]
    out = out.reshape(2, 2, N, H, Wd, Cout)
    out = jnp.transpose(out, (2, 3, 0, 4, 1, 5)).reshape(N, 2 * H, 2 * Wd, Cout)
    return out


# pure-JAX reference (dilate + pad + flipped-kernel im2col) used only for a
# one-off correctness check of the phase decomposition in __main__.
def _ref_conv_transpose2d(x_nhwc, W, bias, stride, padding):
    Cin, Cout, k, _ = W.shape
    N, H, Wd, C = x_nhwc.shape
    s = stride
    xd = jnp.zeros((N, (H - 1) * s + 1, (Wd - 1) * s + 1, C), x_nhwc.dtype)
    xd = xd.at[:, ::s, ::s, :].set(x_nhwc)
    pad = k - 1 - padding
    xp = jnp.pad(xd, ((0, 0), (pad, pad), (pad, pad), (0, 0)))
    Ho, Wo = xp.shape[1] - k + 1, xp.shape[2] - k + 1
    cols = [xp[:, kh:kh + Ho, kw:kw + Wo, :] for kh in range(k) for kw in range(k)]
    patches = jnp.stack(cols, axis=3).reshape(N * Ho * Wo, k * k * Cin)
    Wmat = jnp.flip(W, axis=(2, 3)).transpose(2, 3, 0, 1).reshape(k * k * Cin, Cout)
    return (patches @ Wmat + bias).reshape(N, Ho, Wo, Cout)


# ---------------------------------------------------------------------------
# Pallas kernel 3: GRU recurrence (W_hh resident in VMEM, h carried in scratch)
# ---------------------------------------------------------------------------
def _gru_step_kernel(gi_ref, whh_ref, bhh_ref, o_ref, h_ref, *, hidden):
    @pl.when(pl.program_id(0) == 0)
    def _():
        h_ref[...] = jnp.zeros_like(h_ref)

    h = h_ref[...]
    gh = jnp.dot(h, whh_ref[...], preferred_element_type=jnp.float32) + bhh_ref[...]
    gi = gi_ref[0]
    Hd = hidden

    def _sig(v):
        return 1.0 / (1.0 + jnp.exp(-v))

    r = _sig(gi[:, :Hd] + gh[:, :Hd])
    z = _sig(gi[:, Hd:2 * Hd] + gh[:, Hd:2 * Hd])
    n = jnp.tanh(gi[:, 2 * Hd:3 * Hd] + r * gh[:, 2 * Hd:3 * Hd])
    h_new = (1.0 - z) * n + z * h

    h_ref[...] = h_new
    o_ref[0] = h_new


def _gru_recurrence(gi, whh_t, bhh, hidden):
    T, B, G3 = gi.shape
    Bp = _round_up(B, 8)
    if Bp != B:
        gi = jnp.pad(gi, ((0, 0), (0, Bp - B), (0, 0)))
    out = pl.pallas_call(
        functools.partial(_gru_step_kernel, hidden=hidden),
        out_shape=jax.ShapeDtypeStruct((T, Bp, hidden), jnp.float32),
        grid_spec=pltpu.PrefetchScalarGridSpec(
            num_scalar_prefetch=0,
            grid=(T,),
            in_specs=[
                pl.BlockSpec((1, Bp, G3), lambda t: (t, 0, 0)),
                pl.BlockSpec((hidden, G3), lambda t: (0, 0)),
                pl.BlockSpec((1, G3), lambda t: (0, 0)),
            ],
            out_specs=pl.BlockSpec((1, Bp, hidden), lambda t: (t, 0, 0)),
            scratch_shapes=[pltpu.VMEM((Bp, hidden), jnp.float32)],
        ),
        compiler_params=pltpu.CompilerParams(dimension_semantics=("arbitrary",)),
    )(gi.astype(jnp.float32), whh_t.astype(jnp.float32),
      bhh.reshape(1, -1).astype(jnp.float32))
    return out[:, :B, :]


def gru_forward(x, gru_params):
    # x: (T, B, I); PyTorch default: h0 = 0, gate order (r, z, n).
    for (Wih, Whh, bih, bhh) in gru_params:
        T, B, I = x.shape
        Hdim = Whh.shape[1]
        # batched input projection: one matmul for ALL timesteps of this layer
        gi = pallas_bmm_bias(x.reshape(1, T * B, I), Wih.T[None], bih[None])
        gi = gi[0].reshape(T, B, 3 * Hdim)
        x = _gru_recurrence(gi, Whh.T, bhh, Hdim)
    return x


# ---------------------------------------------------------------------------
# Full Decoder2 forward
# ---------------------------------------------------------------------------
@jax.jit
def decoder2_forward(y_nchw, mns, sds, p):
    y = jnp.transpose(y_nchw, (0, 2, 3, 1))                        # NCHW -> NHWC

    y = apply_sample_affine(y, sds[-1], mns[-1])
    y = conv_transpose2d_s2(y, p["l11_w"], p["l11_b"])
    y = batchnorm_act(y, p["l111_g"], p["l111_b"], slope=LRELU_SLOPE)   # l111 + l12

    y = apply_sample_affine(y, sds[-2], mns[-2])
    y = conv_transpose2d_s1(y, p["l21_w"], p["l21_b"], slope=LRELU_SLOPE)  # l21 + l22 fused

    y = apply_sample_affine(y, sds[-3], mns[-3])
    y = conv_transpose2d_s2(y, p["l31_w"], p["l31_b"])
    y = batchnorm_act(y, p["l333_g"], p["l333_b"], slope=LRELU_SLOPE)   # l333 + l32

    y = apply_sample_affine(y, sds[-4], mns[-4])
    y = conv_transpose2d_s1(y, p["l41_w"], p["l41_b"], slope=LRELU_SLOPE)  # l41 + l42 fused

    y = apply_sample_affine(y, sds[-5], mns[-5])
    y = conv_transpose2d_s2(y, p["l51_w"], p["l51_b"])
    y = batchnorm_act(y, p["l555_g"], p["l555_b"], slope=LRELU_SLOPE)   # l555 + l52

    y = conv_transpose2d_s2(y, p["l6_w"], p["l6_b"])
    y = y[..., 0]                                                  # squeeze(1) in NCHW terms

    # nn.GRU (batch_first=False): input interpreted as (seq=N, batch=Hf, feat=Wf=128)
    out = gru_forward(y, p["gru"])
    return out


# ---------------------------------------------------------------------------
# Deterministic parameter init (shapes from Decoder2.__init__)
# ---------------------------------------------------------------------------
def init_params(key):
    keys = jax.random.split(key, 13)

    def w(k, shape, scale=0.02):
        return scale * jax.random.normal(k, shape, dtype=jnp.float32)

    p = {
        "l11_w": w(keys[0], (512, 512, 4, 4)), "l11_b": w(keys[1], (512,)),
        "l111_g": jnp.ones((512,), jnp.float32), "l111_b": jnp.zeros((512,), jnp.float32),
        "l21_w": w(keys[2], (512, 256, 3, 3)), "l21_b": w(keys[3], (256,)),
        "l31_w": w(keys[4], (256, 256, 4, 4)), "l31_b": w(keys[5], (256,)),
        "l333_g": jnp.ones((256,), jnp.float32), "l333_b": jnp.zeros((256,), jnp.float32),
        "l41_w": w(keys[6], (256, 128, 3, 3)), "l41_b": w(keys[7], (128,)),
        "l51_w": w(keys[8], (128, 64, 4, 4)), "l51_b": w(keys[9], (64,)),
        "l555_g": jnp.ones((64,), jnp.float32), "l555_b": jnp.zeros((64,), jnp.float32),
        "l6_w": w(keys[10], (64, 1, 4, 4)), "l6_b": w(keys[11], (1,)),
    }
    gkeys = jax.random.split(keys[12], 8)
    gru = []
    for layer in range(2):
        gru.append((
            w(gkeys[4 * layer + 0], (384, 128)),   # weight_ih_l{layer}
            w(gkeys[4 * layer + 1], (384, 128)),   # weight_hh_l{layer}
            w(gkeys[4 * layer + 2], (384,)),       # bias_ih_l{layer}
            w(gkeys[4 * layer + 3], (384,)),       # bias_hh_l{layer}
        ))
    p["gru"] = tuple(gru)
    return p


if __name__ == "__main__":
    # --- one-off check: phase-decomposed stride-2 ConvTranspose == dilate+im2col ref ---
    ck = jax.random.split(jax.random.PRNGKey(1), 3)
    xt = jax.random.normal(ck[0], (1, 3, 5, 8), jnp.float32)
    Wt = 0.1 * jax.random.normal(ck[1], (8, 8, 4, 4), jnp.float32)
    bt = 0.1 * jax.random.normal(ck[2], (8,), jnp.float32)
    got = conv_transpose2d_s2(xt, Wt, bt, use_bf16=False)
    ref = _ref_conv_transpose2d(xt, Wt, bt, stride=2, padding=1)
    assert jnp.allclose(got, ref, atol=2e-2, rtol=2e-2), \
        float(jnp.max(jnp.abs(got - ref)))

    key = jax.random.PRNGKey(0)
    pkey, xkey, mkey = jax.random.split(key, 3)
    params = init_params(pkey)

    # input: (N, 512, H0, W0); W0 must be 8 so that after 4 stride-2 upsamples
    # the final width is 128 (the GRU input size).
    N, H0, W0 = 2, 2, 8
    y = jax.random.normal(xkey, (N, 512, H0, W0), dtype=jnp.float32)

    # mns / sds lists: forward uses indices -1..-5 with channel counts
    # 512, 512, 256, 256, 128 respectively -> list order [128, 256, 256, 512, 512]
    chans = [128, 256, 256, 512, 512]
    mkeys = jax.random.split(mkey, 10)
    mns = tuple(0.1 * jax.random.normal(mkeys[i], (N, c, 1, 1), dtype=jnp.float32)
                for i, c in enumerate(chans))
    sds = tuple(1.0 + 0.1 * jax.random.normal(mkeys[5 + i], (N, c, 1, 1), dtype=jnp.float32)
                for i, c in enumerate(chans))

    out = decoder2_forward(y, mns, sds, params)
    out = jax.block_until_ready(out)
    assert out.shape == (N, 16 * H0, 128), out.shape
    assert bool(jnp.all(jnp.isfinite(out)))
    print("KERNEL_OK")
</pallas_src>

<mosaic_0001>
module attributes {stable_mosaic.version = 11 : i64} {
  func.func @_bmm_bias_kernel(%arg0: i32, %arg1: i32, %arg2: i32, %arg3: i32, %arg4: memref<1x16x128xf32, #tpu.memory_space<vmem>>, %arg5: memref<1x128x128xf32, #tpu.memory_space<vmem>>, %arg6: memref<1x1x128xf32, #tpu.memory_space<vmem>>, %arg7: memref<1x16x128xf32, #tpu.memory_space<vmem>>, %arg8: memref<16x128xf32, #tpu.memory_space<vmem>>) attributes {dimension_semantics = [#tpu.dimension_semantics<parallel>, #tpu.dimension_semantics<parallel>, #tpu.dimension_semantics<parallel>, #tpu.dimension_semantics<arbitrary>], iteration_bounds = array<i64: 4, 1, 1, 1>, scalar_prefetch = 0 : i64, scratch_operands = 1 : i64, tpu.core_type = #tpu.core_type<tc>, window_params = [{transform_indices = @transform_0, window_bounds = array<i64: 1, 16, 128>}, {transform_indices = @transform_1, window_bounds = array<i64: 1, 128, 128>}, {transform_indices = @transform_2, window_bounds = array<i64: 1, 1, 128>}, {transform_indices = @transform_3, window_bounds = array<i64: 1, 16, 128>}]} {
    %c0_i32 = arith.constant 0 : i32
    %0 = arith.cmpi eq, %arg3, %c0_i32 : i32
    %1 = arith.extui %0 : i1 to i32
    %c0_i32_0 = arith.constant 0 : i32
    %2 = arith.cmpi ne, %1, %c0_i32_0 : i32
    scf.if %2 {
      %cst_12 = arith.constant 0.000000e+00 : f32
      %14 = vector.broadcast %cst_12 : f32 to vector<16x128xf32>
      %c0_13 = arith.constant 0 : index
      %c0_14 = arith.constant 0 : index
      %15 = vector.load %arg8[%c0_13, %c0_14] : memref<16x128xf32, #tpu.memory_space<vmem>>, vector<16x128xf32>
      tpu.vector_store %arg8[%c0_13, %c0_14], %14 {strides = array<i32>} : memref<16x128xf32, #tpu.memory_space<vmem>>, vector<16x128xf32>,
    } else {
    }
    %c0 = arith.constant 0 : index
    %c0_1 = arith.constant 0 : index
    %3 = vector.load %arg8[%c0, %c0_1] : memref<16x128xf32, #tpu.memory_space<vmem>>, vector<16x128xf32>
    %c0_2 = arith.constant 0 : index
    %c0_3 = arith.constant 0 : index
    %c0_4 = arith.constant 0 : index
    %4 = vector.load %arg4[%c0_2, %c0_3, %c0_4] : memref<1x16x128xf32, #tpu.memory_space<vmem>>, vector<1x16x128xf32>
    %5 = vector.shape_cast %4 : vector<1x16x128xf32> to vector<16x128xf32>
    %c0_5 = arith.constant 0 : index
    %c0_6 = arith.constant 0 : index
    %c0_7 = arith.constant 0 : index
    %6 = vector.load %arg5[%c0_5, %c0_6, %c0_7] : memref<1x128x128xf32, #tpu.memory_space<vmem>>, vector<1x128x128xf32>
    %7 = vector.shape_cast %6 : vector<1x128x128xf32> to vector<128x128xf32>
    %cst = arith.constant dense<0.000000e+00> : vector<16x128xf32>
    %8 = tpu.matmul %5, %7, %cst {dimension_numbers = #tpu.dot_dimension_numbers<[1], [0], [0], [1], [0, 0, 1, 1], [], []>} : vector<16x128xf32>, vector<128x128xf32>, vector<16x128xf32> -> vector<16x128xf32>
    %9 = arith.addf %3, %8 : vector<16x128xf32>
    %c0_8 = arith.constant 0 : index
    %c0_9 = arith.constant 0 : index
    %10 = vector.load %arg8[%c0_8, %c0_9] : memref<16x128xf32, #tpu.memory_space<vmem>>, vector<16x128xf32>
    tpu.vector_store %arg8[%c0_8, %c0_9], %9 {strides = array<i32>} : memref<16x128xf32, #tpu.memory_space<vmem>>, vector<16x128xf32>,
    %c0_i32_10 = arith.constant 0 : i32
    %11 = arith.cmpi eq, %arg3, %c0_i32_10 : i32
    %12 = arith.extui %11 : i1 to i32
    %c0_i32_11 = arith.constant 0 : i32
    %13 = arith.cmpi ne, %12, %c0_i32_11 : i32
    scf.if %13 {
      %c0_12 = arith.constant 0 : index
      %c0_13 = arith.constant 0 : index
      %14 = vector.load %arg8[%c0_12, %c0_13] : memref<16x128xf32, #tpu.memory_space<vmem>>, vector<16x128xf32>
      %c0_14 = arith.constant 0 : index
      %c0_15 = arith.constant 0 : index
      %c0_16 = arith.constant 0 : index
      %15 = vector.load %arg6[%c0_14, %c0_15, %c0_16] : memref<1x1x128xf32, #tpu.memory_space<vmem>>, vector<1x1x128xf32>
      %16 = vector.shape_cast %15 : vector<1x1x128xf32> to vector<1x128xf32>
      %17 = vector.broadcast %16 : vector<1x128xf32> to vector<16x128xf32>
      %18 = arith.addf %14, %17 : vector<16x128xf32>
      %c0_17 = arith.constant 0 : index
      %c0_18 = arith.constant 0 : index
      %c0_19 = arith.constant 0 : index
      %19 = vector.load %arg7[%c0_17, %c0_18, %c0_19] : memref<1x16x128xf32, #tpu.memory_space<vmem>>, vector<1x16x128xf32>
      %20 = vector.shape_cast %19 : vector<1x16x128xf32> to vector<16x128xf32>
      %21 = vector.shape_cast %18 : vector<16x128xf32> to vector<1x16x128xf32>
      tpu.vector_store %arg7[%c0_17, %c0_18, %c0_19], %21 {strides = array<i32>} : memref<1x16x128xf32, #tpu.memory_space<vmem>>, vector<1x16x128xf32>,
    } else {
    }
    return
  }
  func.func @transform_0(%arg0: i32, %arg1: i32, %arg2: i32, %arg3: i32) -> (i32, i32, i32) {
    %c0_i32 = arith.constant 0 : i32
    return %arg0, %arg1, %arg3 : i32, i32, i32
  }
  func.func @transform_1(%arg0: i32, %arg1: i32, %arg2: i32, %arg3: i32) -> (i32, i32, i32) {
    %c0_i32 = arith.constant 0 : i32
    return %arg0, %arg3, %arg2 : i32, i32, i32
  }
  func.func @transform_2(%arg0: i32, %arg1: i32, %arg2: i32, %arg3: i32) -> (i32, i32, i32) {
    %c0_i32 = arith.constant 0 : i32
    %c0_i32_0 = arith.constant 0 : i32
    return %arg0, %c0_i32, %arg2 : i32, i32, i32
  }
  func.func @transform_3(%arg0: i32, %arg1: i32, %arg2: i32, %arg3: i32) -> (i32, i32, i32) {
    %c0_i32 = arith.constant 0 : i32
    return %arg0, %arg1, %arg2 : i32, i32, i32
  }
}

</mosaic_0001>

<llo_original>
// kernel: tpu_custom_call.1
$region0: #{tpu_custom_call.1}
  #allocation0 [shape = 'u32[]', space=smem, size = 0x4, offset = 0x4, fixed_abs, tag = 'smem constant byte address 0x4 - core index']
  #allocation1 [shape = 'u32[144,128]{1,0:T(1,128)}', space=vmem, size = 0x12000, scoped, tag = 'internal scratch']
  #allocation2 [shape = 'f32[16,128]{1,0:T(8,128)}', space=vmem, size = 0x2000, scoped, tag = 'scratch operand']
  %s0 = inlined_call_operand.hbm [shape: f32[4,16,128], index: 0, kind: input, shape index: {}]
  %s1 = inlined_call_operand.hbm [shape: f32[4,128,128], index: 1, kind: input, shape index: {}]
  %s2 = inlined_call_operand.vmem [shape: f32[4,1,128], index: 2, kind: input, shape index: {}]
  %s3 = inlined_call_operand.hbm [shape: f32[4,16,128], index: 3, kind: output, shape index: {}]
  %s4 = sld [smem:[#allocation0]]
  $region61: #{tpu_custom_call.1} parent=0
    _
  %s6 = ssub.s32 1, %s4
  %s7 = scalar_select 0, %s6, %s4
  $region1: #{tpu_custom_call.1} parent=0
    #allocation3 [shape = 'u8[16384]{0}', space=vmem, size = 0x4000, scoped, tag = 'input window, operand 0']
    #allocation4 [shape = 's32[2]{0}', space=sflag, size = 0x8, scoped, tag = 'scoped memory for tpu_custom_call.1']
    #allocation5 [shape = 's32[2]{0}', space=sflag, size = 0x8, scoped, tag = 'scoped memory for tpu_custom_call.1']
    #allocation6 [shape = 'u8[131072]{0}', space=vmem, size = 0x20000, scoped, tag = 'input window, operand 1']
    #allocation7 [shape = 's32[2]{0}', space=sflag, size = 0x8, scoped, tag = 'scoped memory for tpu_custom_call.1']
    #allocation8 [shape = 'u8[16384]{0}', space=vmem, size = 0x4000, scoped, tag = 'output window, operand 0']
    %8 = vsyncpa [#allocation4], 0
    %s9 = scalar_lea.sflag [#allocation4], 1
    %10 = vsyncpa %s9, 0
    %11 = vsyncpa [#allocation7], 0
    %s12 = scalar_lea.sflag [#allocation7], 1
    %13 = vsyncpa %s12, 0
    %14 = vsyncpa [#allocation5], 0
    %s15 = scalar_lea.sflag [#allocation5], 1
    %16 = vsyncpa %s15, 0
    loop: start=0, step=1, limit=6
    $region2: #{tpu_custom_call.1} parent=1 // loop_pre_header
      _
    $region3: #{tpu_custom_call.1} parent=1 // loop_header
      %s18 = sphi 0, %s22
      %p19 = scmp.ge.s32.totalorder %s18, 6
      %s25 = sphi 0, %s51
      %s26 = sphi 0, %s47
      %s27 = sphi 0, %s43
      %s28 = sphi 0, %s39
      %s29 = sphi 0, %s25
      %s30 = sphi 0, %s26
      %s31 = sphi 0, %s27
      %s32 = sphi 0, %s28
      %s33 = sphi 0, %s29
      %s34 = sphi 0, %s30
      %s35 = sphi 0, %s31
      %s36 = sphi 0, %s32
      %s58 = sphi 0, %s60
      %s61 = sphi 0, %s58
      %s62 = sphi 0, %s61
      %s78 = sphi 0, %s62
      %s88 = sphi 0, %s90
      %s91 = sphi 0, %s88
      %s92 = sphi 0, %s91
      %s108 = sphi 0, %s92
      %s116 = sphi 0, %s118
      %s119 = sphi 0, %s116
      %s120 = sphi 0, %s119
      %s136 = sphi 0, %s120
      %s146 = sphi 0, %s148
      %s149 = sphi 0, %s146
      %s150 = sphi 0, %s149
      %s166 = sphi 0, %s150
    $region4: #{tpu_custom_call.1} parent=1 // loop_header_branch
      %21 = sbr.rel (%p19) target = $region8
    $region5: #{tpu_custom_call.1} parent=1 // loop_body
      %s23 = ssub.s32 %s18, 1
      %s24 = ssub.s32 %s18, 2
      %s37 = sadd.s32 1, %s28
      %p38 = scmp.ge.s32.totalorder %s37, 1
      %s39 = scalar_select %p38, 0, %s37
      %s40 = sadd.s32 1, %s27
      %s41 = scalar_select %p38, %s40, %s27
      %p42 = scmp.ge.s32.totalorder %s41, 1
      %s43 = scalar_select %p42, 0, %s41
      %s44 = sadd.s32 1, %s26
      %s45 = scalar_select %p42, %s44, %s26
      %p46 = scmp.ge.s32.totalorder %s45, 1
      %s47 = scalar_select %p46, 0, %s45
      %s48 = sadd.s32 1, %s25
      %s49 = scalar_select %p46, %s48, %s25
      %p50 = scmp.ge.s32.totalorder %s49, 4
      %s51 = scalar_select %p50, 0, %s49
      %s52 = ssub.s32 %s25, %s51
      %s53 = ssub.s32 %s26, %s47
      %s54 = sor.u32 %s52, %s53
      %s55 = ssub.s32 %s28, %s39
      %s56 = sor.u32 %s54, %s55
      %p57 = scmp.eq.s32.totalorder %s56, 0
      %s59 = sadd.s32 %s58, 1
      %s60 = scalar_select %p57, %s58, %s59
      %p63 = pneg %p57
      %p64 = scmp.eq.s32.totalorder %s18, 3
      %p65 = por %p63, %p64
      %p66 = scmp.ne.s32.totalorder %s58, %s61
      %p67 = scmp.eq.s32.totalorder %s18, 0
      %p68 = por %p66, %p67
      %p69 = scmp.ne.s32.totalorder %s58, %s61
      %p70 = scmp.eq.s32.totalorder %s23, 3
      %p71 = por %p69, %p70
      %p72 = scmp.ne.s32.totalorder %s61, %s62
      %p73 = scmp.eq.s32.totalorder %s23, 0
      %p74 = por %p72, %p73
      %p75 = scmp.ne.s32.totalorder %s61, %s62
      %p76 = scmp.eq.s32.totalorder %s24, 3
      %p77 = por %p75, %p76
      %p79 = scmp.ne.s32.totalorder %s62, %s78
      %p80 = scmp.eq.s32.totalorder %s24, 0
      %p81 = por %p79, %p80
      %s82 = ssub.s32 %s25, %s51
      %s83 = ssub.s32 %s28, %s39
      %s84 = sor.u32 %s82, %s83
      %s85 = ssub.s32 %s27, %s43
      %s86 = sor.u32 %s84, %s85
      %p87 = scmp.eq.s32.totalorder %s86, 0
      %s89 = sadd.s32 %s88, 1
      %s90 = scalar_select %p87, %s88, %s89
      %p93 = pneg %p87
      %p94 = scmp.eq.s32.totalorder %s18, 3
      %p95 = por %p93, %p94
      %p96 = scmp.ne.s32.totalorder %s88, %s91
      %p97 = scmp.eq.s32.totalorder %s18, 0
      %p98 = por %p96, %p97
      %p99 = scmp.ne.s32.totalorder %s88, %s91
      %p100 = scmp.eq.s32.totalorder %s23, 3
      %p101 = por %p99, %p100
      %p102 = scmp.ne.s32.totalorder %s91, %s92
      %p103 = scmp.eq.s32.totalorder %s23, 0
      %p104 = por %p102, %p103
      %p105 = scmp.ne.s32.totalorder %s91, %s92
      %p106 = scmp.eq.s32.totalorder %s24, 3
      %p107 = por %p105, %p106
      %p109 = scmp.ne.s32.totalorder %s92, %s108
      %p110 = scmp.eq.s32.totalorder %s24, 0
      %p111 = por %p109, %p110
      %s112 = ssub.s32 %s25, %s51
      %s113 = ssub.s32 %s27, %s43
      %s114 = sor.u32 %s112, %s113
      %p115 = scmp.eq.s32.totalorder %s114, 0
      %s117 = sadd.s32 %s116, 1
      %s118 = scalar_select %p115, %s116, %s117
      %p121 = pneg %p115
      %p122 = scmp.eq.s32.totalorder %s18, 3
      %p123 = por %p121, %p122
      %p124 = scmp.ne.s32.totalorder %s116, %s119
      %p125 = scmp.eq.s32.totalorder %s18, 0
      %p126 = por %p124, %p125
      %p127 = scmp.ne.s32.totalorder %s116, %s119
      %p128 = scmp.eq.s32.totalorder %s23, 3
      %p129 = por %p127, %p128
      %p130 = scmp.ne.s32.totalorder %s119, %s120
      %p131 = scmp.eq.s32.totalorder %s23, 0
      %p132 = por %p130, %p131
      %p133 = scmp.ne.s32.totalorder %s119, %s120
      %p134 = scmp.eq.s32.totalorder %s24, 3
      %p135 = por %p133, %p134
      %p137 = scmp.ne.s32.totalorder %s120, %s136
      %p138 = scmp.eq.s32.totalorder %s24, 0
      %p139 = por %p137, %p138
      %s140 = ssub.s32 %s25, %s51
      %s141 = ssub.s32 %s26, %s47
      %s142 = sor.u32 %s140, %s141
      %s143 = ssub.s32 %s27, %s43
      %s144 = sor.u32 %s142, %s143
      %p145 = scmp.eq.s32.totalorder %s144, 0
      %s147 = sadd.s32 %s146, 1
      %s148 = scalar_select %p145, %s146, %s147
      %p151 = pneg %p145
      %p152 = scmp.eq.s32.totalorder %s18, 3
      %p153 = por %p151, %p152
      %p154 = scmp.ne.s32.totalorder %s146, %s149
      %p155 = scmp.eq.s32.totalorder %s18, 0
      %p156 = por %p154, %p155
      %p157 = scmp.ne.s32.totalorder %s146, %s149
      %p158 = scmp.eq.s32.totalorder %s23, 3
      %p159 = por %p157, %p158
      %p160 = scmp.ne.s32.totalorder %s149, %s150
      %p161 = scmp.eq.s32.totalorder %s23, 0
      %p162 = por %p160, %p161
      %p163 = scmp.ne.s32.totalorder %s149, %s150
      %p164 = scmp.eq.s32.totalorder %s24, 3
      %p165 = por %p163, %p164
      %p167 = scmp.ne.s32.totalorder %s150, %s166
      %p168 = scmp.eq.s32.totalorder %s24, 0
      %p169 = por %p167, %p168
      %p170 = scmp.le.s32.totalorder 1, %s18
      %p171 = scmp.lt.s32.totalorder %s18, 5
      %p172 = pnand %p170, %p171
      %p173 = pneg %p172
      // Predicated region
      $region9: #{tpu_custom_call.1} parent=5 // pred_check
        _
      $region10: #{tpu_custom_call.1} parent=5 // pred_check_branch
        %175 = sbr.rel (%p172) target = $region12
      $region11: #{tpu_custom_call.1} parent=5 // pred_region
        %s176 = ssub.s32 %s18, 1
      $region12: #{tpu_custom_call.1} parent=5 // pred_fallthru
        _
      %p177 = scmp.lt.s32.totalorder %s18, 4
      // Predicated region
      $region13: #{tpu_custom_call.1} parent=5 // pred_check
        %p178 = pneg %p177
      $region14: #{tpu_custom_call.1} parent=5 // pred_check_branch
        %180 = sbr.rel (%p178) target = $region16
      $region15: #{tpu_custom_call.1} parent=5 // pred_region
        // Predicated region
        $region17: #{tpu_custom_call.1} parent=15 // pred_check
          %p181 = pneg %p68
        $region18: #{tpu_custom_call.1} parent=15 // pred_check_branch
          %183 = sbr.rel (%p181) target = $region20
        $region19: #{tpu_custom_call.1} parent=15 // pred_region
          %s184 = sand.u32 %s58, 1
          %s185 = scalar_lea.sflag [#allocation4], %s184
          %s186 = sand.u32 %s58, 1
          %s187 = smul.addr %s186, 16
          %s188 = scalar_lea.vmem [#allocation3], %s187
          %s189 = smul.u32 2, %s26
          %s191 = ssub.s32 256, 256
          %192 = vsyncadd %s185, %s191
          %s193 = sadd.s32 %s28, %s189
          %s194 = smul.addr %s25, 2
          %s195 = sadd.s32 %s193, %s194
          %s196 = smul.addr %s195, 128
          %s197 = scalar_lea.hbm %s0, %s196
          %s198 = sshll.u32 %s188, 4
          %s199 = int_to_ptr.vmem [resolvable:$true] %s198
          %204 = dma.hbm_to_vmem [thread:$0]  %s197, 256, %s199, %s185, 128, 128, 8
        $region20: #{tpu_custom_call.1} parent=15 // pred_fallthru
          _
        // Predicated region
        $region21: #{tpu_custom_call.1} parent=15 // pred_check
          %p205 = pneg %p98
        $region22: #{tpu_custom_call.1} parent=15 // pred_check_branch
          %207 = sbr.rel (%p205) target = $region24
        $region23: #{tpu_custom_call.1} parent=15 // pred_region
          %s208 = sand.u32 %s88, 1
          %s209 = scalar_lea.sflag [#allocation7], %s208
          %s210 = sand.u32 %s88, 1
          %s211 = smul.addr %s210, 128
          %s212 = scalar_lea.vmem [#allocation6], %s211
          %s213 = smul.u32 16, %s28
          %s215 = ssub.s32 2048, 2048
          %216 = vsyncadd %s209, %s215
          %s217 = sadd.s32 %s27, %s213
          %s218 = smul.addr %s25, 16
          %s219 = sadd.s32 %s217, %s218
          %s220 = smul.addr %s219, 128
          %s221 = scalar_lea.hbm %s1, %s220
          %s222 = sshll.u32 %s212, 4
          %s223 = int_to_ptr.vmem [resolvable:$true] %s222
          %228 = dma.hbm_to_vmem [thread:$0]  %s221, 2048, %s223, %s209, 128, 128, 8
        $region24: #{tpu_custom_call.1} parent=15 // pred_fallthru
          _
        // Predicated region
        $region25: #{tpu_custom_call.1} parent=15 // pred_check
          %p229 = pneg %p126
        $region26: #{tpu_custom_call.1} parent=15 // pred_check_branch
          %231 = sbr.rel (%p229) target = $region28
        $region27: #{tpu_custom_call.1} parent=15 // pred_region
          %p232 = scmp.lt.s32.totalorder %s25, 3
          %s233 = scalar_select %p232, %s25, 3
          %p234 = scmp.lt.s32.totalorder %s27, 0
          %s235 = scalar_select %p234, %s27, 0
          %s236 = sadd.s32 %s235, %s233
          %s237 = scalar_lea.vmem %s2, %s236
        $region28: #{tpu_custom_call.1} parent=15 // pred_fallthru
          _
      $region16: #{tpu_custom_call.1} parent=5 // pred_fallthru
        _
      %p238 = scmp.le.s32.totalorder 1, %s18
      %p239 = scmp.lt.s32.totalorder %s18, 5
      %p240 = pnand %p238, %p239
      %p241 = pneg %p240
      // Predicated region
      $region29: #{tpu_custom_call.1} parent=5 // pred_check
        _
      $region30: #{tpu_custom_call.1} parent=5 // pred_check_branch
        %243 = sbr.rel (%p240) target = $region32
      $region31: #{tpu_custom_call.1} parent=5 // pred_region
        %s244 = ssub.s32 %s18, 1
        %s245 = sand.u32 %s61, 1
        %s246 = scalar_lea.sflag [#allocation4], %s245
        %s247 = sand.u32 %s61, 1
        %s248 = smul.addr %s247, 16
        %s249 = scalar_lea.vmem [#allocation3], %s248
        // Predicated region
        $region33: #{tpu_custom_call.1} parent=31 // pred_check
          %p250 = pneg %p74
        $region34: #{tpu_custom_call.1} parent=31 // pred_check_branch
          %252 = sbr.rel (%p250) target = $region36
        $region35: #{tpu_custom_call.1} parent=31 // pred_region
          %253 = dma.done %s246, 256
        $region36: #{tpu_custom_call.1} parent=31 // pred_fallthru
          _
        %s254 = sand.u32 %s91, 1
        %s255 = scalar_lea.sflag [#allocation7], %s254
        %s256 = sand.u32 %s91, 1
        %s257 = smul.addr %s256, 128
        %s258 = scalar_lea.vmem [#allocation6], %s257
        // Predicated region
        $region37: #{tpu_custom_call.1} parent=31 // pred_check
          %p259 = pneg %p104
        $region38: #{tpu_custom_call.1} parent=31 // pred_check_branch
          %261 = sbr.rel (%p259) target = $region40
        $region39: #{tpu_custom_call.1} parent=31 // pred_region
          %262 = dma.done %s255, 2048
        $region40: #{tpu_custom_call.1} parent=31 // pred_fallthru
          _
        %s263 = sand.u32 %s61, 1
        %s264 = scalar_lea.sflag [#allocation4], %s263
        %s265 = sand.u32 %s61, 1
        %s266 = smul.addr %s265, 16
        %s267 = scalar_lea.vmem [#allocation3], %s266
        %p268 = pneg %p74
        %p269 = pneg %p71
        %s270 = sand.u32 %s91, 1
        %s271 = scalar_lea.sflag [#allocation7], %s270
        %s272 = sand.u32 %s91, 1
        %s273 = smul.addr %s272, 128
        %s274 = scalar_lea.vmem [#allocation6], %s273
        %p275 = pneg %p104
        %p276 = pneg %p101
        %p277 = scmp.lt.s32.totalorder %s29, 3
        %s278 = scalar_select %p277, %s29, 3
        %p279 = scmp.lt.s32.totalorder %s31, 0
        %s280 = scalar_select %p279, %s31, 0
        %s281 = sadd.s32 %s280, %s278
        %s282 = scalar_lea.vmem %s2, %s281
        %p283 = pneg %p132
        %p284 = pneg %p129
        %p285 = pneg %p162
        %p286 = pneg %p159
        %s287 = sand.u32 %s149, 1
        %s288 = scalar_lea.sflag [#allocation5], %s287
        %s289 = sand.u32 %s149, 1
        %s290 = smul.addr %s289, 16
        %s291 = scalar_lea.vmem [#allocation8], %s290
        %s292 = smul.u32 2, %s30
        %s293 = smul.u32 16, %s32
        %p294 = scmp.lt.s32.totalorder %s29, 3
        %s295 = scalar_select %p294, %s29, 3
        %p296 = scmp.lt.s32.totalorder %s31, 0
        %s297 = scalar_select %p296, %s31, 0
        %s298 = sadd.s32 %s297, %s295
        %s299 = scalar_lea.vmem %s2, %s298
        %s300 = smul.u32 2, %s30
        %p301 = scmp.eq.s32.totalorder %s32, 0
        // Predicated region
        $region41: #{tpu_custom_call.1} parent=31 // pred_check
          %p302 = pneg %p301
        $region42: #{tpu_custom_call.1} parent=31 // pred_check_branch
          %304 = sbr.rel (%p302) target = $region44
        $region43: #{tpu_custom_call.1} parent=31 // pred_region
          %305 = vst [vmem:[#allocation2] sm:$0xff] 0.0
          %306 = vst [vmem:[#allocation2 + $0x8] sm:$0xff] 0.0
        $region44: #{tpu_custom_call.1} parent=31 // pred_fallthru
          _
        %v307 = vld [vmem:[#allocation2] sm:$0xff]
        %v308 = vld [vmem:[#allocation2 + $0x8] sm:$0xff]
        %v309 = vld [vmem:[%s249] sm:$0xff]
        %v310 = vld [vmem:[%s249 + $0x8] sm:$0xff]
        %v311 = vld [vmem:[%s258] sm:$0xff]
        %v312 = vld [vmem:[%s258 + $0x8] sm:$0xff]
        %v313 = vld [vmem:[%s258 + $0x10] sm:$0xff]
        %v314 = vld [vmem:[%s258 + $0x18] sm:$0xff]
        %v315 = vld [vmem:[%s258 + $0x20] sm:$0xff]
        %v316 = vld [vmem:[%s258 + $0x28] sm:$0xff]
        %v317 = vld [vmem:[%s258 + $0x30] sm:$0xff]
        %v318 = vld [vmem:[%s258 + $0x38] sm:$0xff]
        %v319 = vld [vmem:[%s258 + $0x40] sm:$0xff]
        %v320 = vld [vmem:[%s258 + $0x48] sm:$0xff]
        %v321 = vld [vmem:[%s258 + $0x50] sm:$0xff]
        %v322 = vld [vmem:[%s258 + $0x58] sm:$0xff]
        %v323 = vld [vmem:[%s258 + $0x60] sm:$0xff]
        %v324 = vld [vmem:[%s258 + $0x68] sm:$0xff]
        %v325 = vld [vmem:[%s258 + $0x70] sm:$0xff]
        %v326 = vld [vmem:[%s258 + $0x78] sm:$0xff]
        %327 = vmatprep.subr.mxu0 0.0
        %328 = vmatpush1.msra.mxu0 %v311
        %329 = vmatprep.subr.mxu0 0.0
        %330 = vmatpush1.msra.mxu0 %v312
        %331 = vmatprep.subr.mxu0 0.0
        %332 = vmatpush1.msra.mxu0 %v313
        %333 = vmatprep.subr.mxu0 0.0
        %334 = vmatpush1.msra.mxu0 %v314
        %335 = vmatprep.subr.mxu0 0.0
        %336 = vmatpush1.msra.mxu0 %v315
        %337 = vmatprep.subr.mxu0 0.0
        %338 = vmatpush1.msra.mxu0 %v316
        %339 = vmatprep.subr.mxu0 0.0
        %340 = vmatpush1.msra.mxu0 %v317
        %341 = vmatprep.subr.mxu0 0.0
        %342 = vmatpush1.msra.mxu0 %v318
        %343 = vmatprep.subr.mxu0 0.0
        %344 = vmatpush1.msra.mxu0 %v319
        %345 = vmatprep.subr.mxu0 0.0
        %346 = vmatpush1.msra.mxu0 %v320
        %347 = vmatprep.subr.mxu0 0.0
        %348 = vmatpush1.msra.mxu0 %v321
        %349 = vmatprep.subr.mxu0 0.0
        %350 = vmatpush1.msra.mxu0 %v322
        %351 = vmatprep.subr.mxu0 0.0
        %352 = vmatpush1.msra.mxu0 %v323
        %353 = vmatprep.subr.mxu0 0.0
        %354 = vmatpush1.msra.mxu0 %v324
        %355 = vmatprep.subr.mxu0 0.0
        %356 = vmatpush1.msra.mxu0 %v325
        %357 = vmatprep.subr.mxu0 0.0
        %358 = vmatpush1.msra.mxu0 %v326
        %359 = vmatprep.subr.mxu0 0.0
        %360 = vmatpush1.msra.mxu0 0.0
        %361 = vmatprep.subr.mxu0 0.0
        %362 = vmatpush1.msra.mxu0 0.0
        %363 = vmatprep.subr.mxu0 0.0
        %364 = vmatpush1.msra.mxu0 0.0
        %365 = vmatprep.subr.mxu0 0.0
        %366 = vmatpush1.msra.mxu0 0.0
        %367 = vmatprep.subr.mxu0 0.0
        %368 = vmatpush1.msra.mxu0 0.0
        %369 = vmatprep.subr.mxu0 0.0
        %370 = vmatpush1.msra.mxu0 0.0
        %371 = vmatprep.subr.mxu0 0.0
        %372 = vmatpush1.msra.mxu0 0.0
        %373 = vmatprep.subr.mxu0 0.0
        %374 = vmatpush1.msra.mxu0 0.0
        %375 = vmatprep.subr.mxu0 0.0
        %376 = vmatpush1.msra.mxu0 0.0
        %377 = vmatprep.subr.mxu0 0.0
        %378 = vmatpush1.msra.mxu0 0.0
        %379 = vmatprep.subr.mxu0 0.0
        %380 = vmatpush1.msra.mxu0 0.0
        %381 = vmatprep.subr.mxu0 0.0
        %382 = vmatpush1.msra.mxu0 0.0
        %383 = vmatprep.subr.mxu0 0.0
        %384 = vmatpush1.msra.mxu0 0.0
        %385 = vmatprep.subr.mxu0 0.0
        %386 = vmatpush1.msra.mxu0 0.0
        %387 = vmatprep.subr.mxu0 0.0
        %388 = vmatpush1.msra.mxu0 0.0
        %389 = vmatprep.subr.mxu0 0.0
        %390 = vmatpush1.msra.mxu0 0.0
        %391 = vmatprep.mubr.f32.mxu0 0.0
        %392 = vmatmul.mubr.f32.gmra.mrb[0].mxu0 %v309
        %v393 = vpop.f32.mrb[0].mxu0
        %v394 = vadd.f32 0.0, %v393
        %v395 = vpop.f32.mrb[0].mxu0
        %396 = vmatprep.mubr.f32.mxu0 0.0
        %397 = vmatmul.mubr.f32.gmra.mrb[0].mxu0 %v310
        %v398 = vpop.f32.mrb[0].mxu0
        %v399 = vadd.f32 0.0, %v398
        %v400 = vpop.f32.mrb[0].mxu0
        %401 = vdwg.mxu0
        %v402 = vadd.f32 %v307, %v394
        %v403 = vadd.f32 %v308, %v399
        %404 = vst [vmem:[#allocation2] sm:$0xff] %v402
        %405 = vst [vmem:[#allocation2 + $0x8] sm:$0xff] %v403
        // Predicated region
        $region45: #{tpu_custom_call.1} parent=31 // pred_check
          %p406 = pneg %p301
        $region46: #{tpu_custom_call.1} parent=31 // pred_check_branch
          %408 = sbr.rel (%p406) target = $region48
        $region47: #{tpu_custom_call.1} parent=31 // pred_region
          %v409 = vld [vmem:[#allocation2] sm:$0xff]
          %v410 = vld [vmem:[#allocation2 + $0x8] sm:$0xff]
          %v411 = vld [vmem:[%s299] sm:$0x1]
          %v413 = vlaneseq
          %v414 = vshrl.u32 %v413, 7
          %v415 = vsub.s32 0, %v414
          %v416 = vrot.slane %v411, %v415
          %v418 = vadd.f32 %v409, %v416
          %v419 = vadd.f32 %v410, %v416
          %420 = vst [vmem:[%s291] sm:$0xff] %v418
          %421 = vst [vmem:[%s291 + $0x8] sm:$0xff] %v419
        $region48: #{tpu_custom_call.1} parent=31 // pred_fallthru
          _
        %s422 = sand.u32 %s149, 1
        %s423 = scalar_lea.sflag [#allocation5], %s422
        %s424 = sand.u32 %s149, 1
        %s425 = smul.addr %s424, 16
        %s426 = scalar_lea.vmem [#allocation8], %s425
        // Predicated region
        $region49: #{tpu_custom_call.1} parent=31 // pred_check
          %p427 = pneg %p159
        $region50: #{tpu_custom_call.1} parent=31 // pred_check_branch
          %429 = sbr.rel (%p427) target = $region52
        $region51: #{tpu_custom_call.1} parent=31 // pred_region
          %s430 = smul.u32 2, %s30
          %s432 = ssub.s32 256, 256
          %433 = vsyncadd %s423, %s432
          %s434 = sadd.s32 %s31, %s430
          %s435 = smul.addr %s29, 2
          %s436 = sadd.s32 %s434, %s435
          %s437 = smul.addr %s436, 128
          %s438 = scalar_lea.hbm %s3, %s437
          %s439 = sshll.u32 %s426, 4
          %s440 = int_to_ptr.vmem [resolvable:$true] %s439
          %445 = dma.vmem_to_hbm [thread:$0]  %s440, 256, %s438, %s423, 128, 128, 8
        $region52: #{tpu_custom_call.1} parent=31 // pred_fallthru
          _
      $region32: #{tpu_custom_call.1} parent=5 // pred_fallthru
        _
      %p446 = scmp.le.s32.totalorder 2, %s18
      // Predicated region
      $region53: #{tpu_custom_call.1} parent=5 // pred_check
        %p447 = pneg %p446
      $region54: #{tpu_custom_call.1} parent=5 // pred_check_branch
        %449 = sbr.rel (%p447) target = $region56
      $region55: #{tpu_custom_call.1} parent=5 // pred_region
        %s450 = ssub.s32 %s18, 2
        // Predicated region
        $region57: #{tpu_custom_call.1} parent=55 // pred_check
          %p451 = pneg %p165
        $region58: #{tpu_custom_call.1} parent=55 // pred_check_branch
          %453 = sbr.rel (%p451) target = $region60
        $region59: #{tpu_custom_call.1} parent=55 // pred_region
          %s454 = sand.u32 %s150, 1
          %s455 = scalar_lea.sflag [#allocation5], %s454
          %s456 = sand.u32 %s150, 1
          %s457 = smul.addr %s456, 16
          %s458 = scalar_lea.vmem [#allocation8], %s457
          %459 = dma.done %s455, 256
        $region60: #{tpu_custom_call.1} parent=55 // pred_fallthru
          _
      $region56: #{tpu_custom_call.1} parent=5 // pred_fallthru
        _
    $region6: #{tpu_custom_call.1} parent=1 // loop_footer
      %s22 = sadd.s32 1, %s18
    $region7: #{tpu_custom_call.1} parent=1 // loop_footer_branch
      %17 = sbr.rel target = $region3
    $region8: #{tpu_custom_call.1} parent=1 // loop_exit
      _
    %460 = vsyncpa [#allocation4], 1
    %s461 = scalar_lea.sflag [#allocation4], 1
    %462 = vsyncpa %s461, 1
    %463 = vsyncpa [#allocation7], 1
    %s464 = scalar_lea.sflag [#allocation7], 1
    %465 = vsyncpa %s464, 1
    %466 = vsyncpa [#allocation5], 1
    %s467 = scalar_lea.sflag [#allocation5], 1
    %468 = vsyncpa %s467, 1

</llo_original>
